<compile_context>
chip_gen: v7x
topology: tpu7x:2x2x1
jax: 0.10.0
libtpu: 0.0.40
codegen_flags: <defaults>
</compile_context>

<pallas_src>
import functools
import math

import jax
import jax.numpy as jnp
from jax.experimental import pallas as pl
from jax.experimental.pallas import tpu as pltpu


def _round_up(x, m):
    return (x + m - 1) // m * m


def _sublane_rows(dtype):
    itemsize = jnp.dtype(dtype).itemsize
    return 8 * max(1, 4 // itemsize)          # 8 rows for f32, 16 for bf16, ...


def _vmem_tile_bytes(rows, lanes, dtype):
    itemsize = jnp.dtype(dtype).itemsize
    return (_round_up(max(rows, 1), _sublane_rows(dtype))
            * _round_up(max(lanes, 1), 128) * itemsize)


def _to_rgb_kernel(style_ref, lin_wt_ref, lin_b_ref, conv_w_ref, rgb_b_ref,
                   x_ref, out_ref, *, lin_scale, lr_mul, conv_scale):
    # --- Modulation (tiny, recomputed each grid step from resident operands).
    # EqualLinear: mod = (style * lin_scale) @ lin_wt + bias * lr_mul -> (1, C)
    mod = jnp.dot(style_ref[...] * lin_scale, lin_wt_ref[...],
                  preferred_element_type=jnp.float32)
    mod = mod + lin_b_ref[...] * lr_mul                      # (1, C)
    w_eff = conv_w_ref[...] * (conv_scale * mod)             # (O, C), f32

    # --- Streamed 1x1 conv: (O, C) @ (C, T_HW) with f32 MXU accumulation.
    x = x_ref[...].astype(jnp.float32)                       # native HBM dtype in
    acc = jnp.dot(w_eff, x, preferred_element_type=jnp.float32)
    out_ref[...] = (acc + rgb_b_ref[...]).astype(out_ref.dtype)


def to_rgb(x, style, conv_weight, lin_weight, lin_bias, rgb_bias, *,
           kernel_size=1, lr_mul=1.0, out_dtype=None, max_tile_lanes=None):
    """ToRGB forward.

    x: (1, C_in, H, W) NCHW (streamed in its native dtype; pass bf16 x to halve
       read traffic), style: (1, w_dim), conv_weight: (1, O, C_in, k, k),
    lin_weight: (C_in, w_dim), lin_bias: (C_in,), rgb_bias: (1, O, 1, 1).
    Returns (1, O, H, W) in `out_dtype` (default: x.dtype).
    """
    batch, in_channel, H, W = x.shape
    assert batch == 1, "reference forward uses a groups=1 conv => only batch==1 is valid"
    assert kernel_size == 1, "ToRGB uses kernel_size=1 (1x1 conv == channel matmul)"
    out_channel = conv_weight.shape[1]
    w_dim = lin_weight.shape[1]
    if out_dtype is None:
        out_dtype = x.dtype

    conv_scale = 1.0 / math.sqrt(in_channel * kernel_size ** 2)
    lin_scale = (1.0 / math.sqrt(w_dim)) * lr_mul

    hw = H * W
    # Free reshape only -- NO host-side dtype cast of the big tensor.
    x_flat = x.reshape(in_channel, hw)

    # Tiny resident operands (parameters): keep in f32 for accuracy.
    style2 = style.reshape(1, w_dim).astype(jnp.float32)
    lin_wt = jnp.transpose(lin_weight).astype(jnp.float32)       # (w_dim, C_in)
    lin_b2 = lin_bias.reshape(1, in_channel).astype(jnp.float32)
    conv_w2 = conv_weight.reshape(out_channel, in_channel).astype(jnp.float32)
    rgb_b2 = rgb_bias.reshape(out_channel, 1).astype(jnp.float32)

    x_isz = jnp.dtype(x.dtype).itemsize
    o_isz = jnp.dtype(out_dtype).itemsize

    # ---- Tile selection: target ~4 MiB of x per grid step (amortizes the
    # ~0.35 us/step overhead), 128-lane multiples, and at least 2-4 tiles when
    # hw is big enough so the "parallel" axis shards across both v7x cores.
    target_x_bytes = 4 * 1024 * 1024
    cap = max(128, min(65536, (target_x_bytes // max(1, in_channel * x_isz))
                       // 128 * 128))
    if max_tile_lanes is not None:
        cap = max(128, (max_tile_lanes // 128) * 128)

    if hw <= 2 * 128:
        t_hw = hw                                   # single tile == full dim
    else:
        min_tiles = 4 if hw >= 4 * 128 else 2
        t_split = max(128, (hw // min_tiles) // 128 * 128)
        t_hw = min(cap, t_split)                    # multiple of 128
    num_tiles = (hw + t_hw - 1) // t_hw             # partial last block is fine

    # ---- VMEM limit: actual double-buffered footprint + small headroom.
    x_buf = _vmem_tile_bytes(in_channel, t_hw, x.dtype)
    out_buf = _vmem_tile_bytes(out_channel, t_hw, out_dtype)
    resident = (_vmem_tile_bytes(1, w_dim, jnp.float32)
                + _vmem_tile_bytes(w_dim, in_channel, jnp.float32)
                + _vmem_tile_bytes(1, in_channel, jnp.float32)
                + _vmem_tile_bytes(out_channel, in_channel, jnp.float32)
                + _vmem_tile_bytes(out_channel, 1, jnp.float32))
    vmem_limit = int(max(2 * (x_buf + out_buf) + 2 * resident + (2 << 20),
                         4 << 20))

    kernel = functools.partial(_to_rgb_kernel, lin_scale=lin_scale,
                               lr_mul=lr_mul, conv_scale=conv_scale)

    resident_bytes = 4 * (w_dim + w_dim * in_channel + in_channel
                          + out_channel * in_channel + out_channel)
    out_flat = pl.pallas_call(
        kernel,
        out_shape=jax.ShapeDtypeStruct((out_channel, hw), out_dtype),
        grid=(num_tiles,),
        in_specs=[
            pl.BlockSpec((1, w_dim), lambda i: (0, 0)),                 # resident
            pl.BlockSpec((w_dim, in_channel), lambda i: (0, 0)),        # resident
            pl.BlockSpec((1, in_channel), lambda i: (0, 0)),            # resident
            pl.BlockSpec((out_channel, in_channel), lambda i: (0, 0)),  # resident
            pl.BlockSpec((out_channel, 1), lambda i: (0, 0)),           # resident
            pl.BlockSpec((in_channel, t_hw), lambda i: (0, i)),         # streamed
        ],
        out_specs=pl.BlockSpec((out_channel, t_hw), lambda i: (0, i)),  # lane-dense
        compiler_params=pltpu.CompilerParams(
            dimension_semantics=("parallel",),      # megacore sharding on v7x
            vmem_limit_bytes=vmem_limit),
        cost_estimate=pl.CostEstimate(
            flops=int(2 * out_channel * in_channel * hw
                      + 2 * w_dim * in_channel * num_tiles),
            transcendentals=0,
            bytes_accessed=int(in_channel * hw * x_isz
                               + out_channel * hw * o_isz
                               + resident_bytes)),
    )(style2, lin_wt, lin_b2, conv_w2, rgb_b2, x_flat)

    return out_flat.reshape(1, out_channel, H, W)


def _reference(x, style, conv_weight, lin_weight, lin_bias, rgb_bias, *,
               kernel_size=1, lr_mul=1.0):
    """Pure-JAX transcription of the PyTorch forward (batch == 1), f32-exact."""
    _, in_channel, H, W = x.shape
    out_channel = conv_weight.shape[1]
    w_dim = lin_weight.shape[1]
    conv_scale = 1.0 / math.sqrt(in_channel * kernel_size ** 2)
    lin_scale = (1.0 / math.sqrt(w_dim)) * lr_mul
    mod = jnp.dot(style, (lin_weight * lin_scale).T,
                  precision=jax.lax.Precision.HIGHEST) + lin_bias * lr_mul
    w = conv_scale * conv_weight[0, :, :, 0, 0] * mod                 # (O, C_in)
    out = jnp.einsum('oc,chw->ohw', w, x[0],
                     precision=jax.lax.Precision.HIGHEST)
    out = out + rgb_bias.reshape(out_channel, 1, 1)
    return out[None].astype(jnp.float32)


if __name__ == "__main__":
    # ToRGB: batch=1 (required by the groups=1 reference conv), in_channel=4,
    # out_channel=3, kernel_size=1, w_space_dim=32, 16x16 spatial.
    batch, in_channel, out_channel, k, w_dim, H, W = 1, 4, 3, 1, 32, 16, 16
    lr_mul = 1.0

    key = jax.random.PRNGKey(0)
    k_x, k_s, k_cw, k_lw, k_b = jax.random.split(key, 5)

    x = jax.random.normal(k_x, (batch, in_channel, H, W), dtype=jnp.float32)
    style = jax.random.normal(k_s, (batch, w_dim), dtype=jnp.float32)

    # Parameter shapes mirror the PyTorch __init__ (rgb bias made nonzero here
    # to exercise the add path; the module itself initializes it to zeros).
    conv_weight = jax.random.normal(k_cw, (1, out_channel, in_channel, k, k),
                                    dtype=jnp.float32)                # torch.randn
    lin_weight = jax.random.normal(k_lw, (in_channel, w_dim),
                                   dtype=jnp.float32) / lr_mul        # randn/lr_mul
    lin_bias = jnp.ones((in_channel,), dtype=jnp.float32)             # bias_init=1
    rgb_bias = 0.1 * jax.random.normal(k_b, (1, out_channel, 1, 1), dtype=jnp.float32)

    ref = _reference(x, style, conv_weight, lin_weight, lin_bias, rgb_bias,
                     kernel_size=k, lr_mul=lr_mul)

    # 1) Default path (f32 stream, f32 output, single-tile grid).
    out = to_rgb(x, style, conv_weight, lin_weight, lin_bias, rgb_bias,
                 kernel_size=k, lr_mul=lr_mul)
    out = jax.block_until_ready(out)
    assert out.shape == (batch, out_channel, H, W)
    assert out.dtype == jnp.float32
    assert jnp.allclose(out, ref, rtol=1e-3, atol=1e-3)

    # 2) Multi-tile grid with a partial (masked) last block: H*W = 400 with
    #    forced 128-lane tiles -> 4 grid steps, last one 16 valid lanes.
    H2, W2 = 20, 20
    x2 = jax.random.normal(jax.random.PRNGKey(1), (batch, in_channel, H2, W2),
                           dtype=jnp.float32)
    ref2 = _reference(x2, style, conv_weight, lin_weight, lin_bias, rgb_bias,
                      kernel_size=k, lr_mul=lr_mul)
    out2 = to_rgb(x2, style, conv_weight, lin_weight, lin_bias, rgb_bias,
                  kernel_size=k, lr_mul=lr_mul, max_tile_lanes=128)
    out2 = jax.block_until_ready(out2)
    assert out2.shape == (batch, out_channel, H2, W2)
    assert jnp.allclose(out2, ref2, rtol=1e-3, atol=1e-3)

    # 3) bf16 output option (halves output write traffic); compute stays f32.
    out3 = to_rgb(x, style, conv_weight, lin_weight, lin_bias, rgb_bias,
                  kernel_size=k, lr_mul=lr_mul, out_dtype=jnp.bfloat16)
    out3 = jax.block_until_ready(out3)
    assert out3.dtype == jnp.bfloat16
    assert jnp.allclose(out3.astype(jnp.float32), ref, rtol=2e-2, atol=2e-2)

    print("KERNEL_OK")
</pallas_src>

<mosaic_0001>
module attributes {stable_mosaic.version = 11 : i64} {
  func.func @_to_rgb_kernel(%arg0: i32, %arg1: memref<1x32xf32, #tpu.memory_space<vmem>>, %arg2: memref<32x4xf32, #tpu.memory_space<vmem>>, %arg3: memref<1x4xf32, #tpu.memory_space<vmem>>, %arg4: memref<3x4xf32, #tpu.memory_space<vmem>>, %arg5: memref<3x1xf32, #tpu.memory_space<vmem>>, %arg6: memref<4x256xf32, #tpu.memory_space<vmem>>, %arg7: memref<3x256xf32, #tpu.memory_space<vmem>>) attributes {dimension_semantics = [#tpu.dimension_semantics<parallel>], iteration_bounds = array<i64: 1>, scalar_prefetch = 0 : i64, scratch_operands = 0 : i64, tpu.core_type = #tpu.core_type<tc>, window_params = [{pipeline_mode = #tpu.pipeline_mode<synchronous>, transform_indices = @transform_0, window_bounds = array<i64: 1, 32>}, {pipeline_mode = #tpu.pipeline_mode<synchronous>, transform_indices = @transform_1, window_bounds = array<i64: 32, 4>}, {pipeline_mode = #tpu.pipeline_mode<synchronous>, transform_indices = @transform_2, window_bounds = array<i64: 1, 4>}, {pipeline_mode = #tpu.pipeline_mode<synchronous>, transform_indices = @transform_3, window_bounds = array<i64: 3, 4>}, {pipeline_mode = #tpu.pipeline_mode<synchronous>, transform_indices = @transform_4, window_bounds = array<i64: 3, 1>}, {transform_indices = @transform_5, window_bounds = array<i64: 4, 256>}, {transform_indices = @transform_6, window_bounds = array<i64: 3, 256>}]} {
    %c0 = arith.constant 0 : index
    %c0_0 = arith.constant 0 : index
    %0 = vector.load %arg1[%c0, %c0_0] : memref<1x32xf32, #tpu.memory_space<vmem>>, vector<1x32xf32>
    %cst = arith.constant 0.176776692 : f32
    %1 = vector.broadcast %cst : f32 to vector<1x32xf32>
    %2 = arith.mulf %0, %1 : vector<1x32xf32>
    %c0_1 = arith.constant 0 : index
    %c0_2 = arith.constant 0 : index
    %3 = vector.load %arg2[%c0_1, %c0_2] : memref<32x4xf32, #tpu.memory_space<vmem>>, vector<32x4xf32>
    %cst_3 = arith.constant dense<0.000000e+00> : vector<1x4xf32>
    %4 = tpu.matmul %2, %3, %cst_3 {dimension_numbers = #tpu.dot_dimension_numbers<[1], [0], [0], [1], [0, 0, 1, 1], [], []>} : vector<1x32xf32>, vector<32x4xf32>, vector<1x4xf32> -> vector<1x4xf32>
    %c0_4 = arith.constant 0 : index
    %c0_5 = arith.constant 0 : index
    %5 = vector.load %arg3[%c0_4, %c0_5] : memref<1x4xf32, #tpu.memory_space<vmem>>, vector<1x4xf32>
    %cst_6 = arith.constant 1.000000e+00 : f32
    %6 = vector.broadcast %cst_6 : f32 to vector<1x4xf32>
    %7 = arith.mulf %5, %6 : vector<1x4xf32>
    %8 = arith.addf %4, %7 : vector<1x4xf32>
    %c0_7 = arith.constant 0 : index
    %c0_8 = arith.constant 0 : index
    %9 = vector.load %arg4[%c0_7, %c0_8] : memref<3x4xf32, #tpu.memory_space<vmem>>, vector<3x4xf32>
    %cst_9 = arith.constant 5.000000e-01 : f32
    %10 = vector.broadcast %cst_9 : f32 to vector<1x4xf32>
    %11 = arith.mulf %10, %8 : vector<1x4xf32>
    %12 = vector.broadcast %11 : vector<1x4xf32> to vector<3x4xf32>
    %13 = arith.mulf %9, %12 : vector<3x4xf32>
    %c0_10 = arith.constant 0 : index
    %c0_11 = arith.constant 0 : index
    %14 = vector.load %arg6[%c0_10, %c0_11] : memref<4x256xf32, #tpu.memory_space<vmem>>, vector<4x256xf32>
    %cst_12 = arith.constant dense<0.000000e+00> : vector<3x256xf32>
    %15 = tpu.matmul %13, %14, %cst_12 {dimension_numbers = #tpu.dot_dimension_numbers<[1], [0], [0], [1], [0, 0, 1, 1], [], []>} : vector<3x4xf32>, vector<4x256xf32>, vector<3x256xf32> -> vector<3x256xf32>
    %c0_13 = arith.constant 0 : index
    %c0_14 = arith.constant 0 : index
    %16 = vector.load %arg5[%c0_13, %c0_14] : memref<3x1xf32, #tpu.memory_space<vmem>>, vector<3x1xf32>
    %17 = vector.broadcast %16 : vector<3x1xf32> to vector<3x256xf32>
    %18 = arith.addf %15, %17 : vector<3x256xf32>
    %c0_15 = arith.constant 0 : index
    %c0_16 = arith.constant 0 : index
    %19 = vector.load %arg7[%c0_15, %c0_16] : memref<3x256xf32, #tpu.memory_space<vmem>>, vector<3x256xf32>
    tpu.vector_store %arg7[%c0_15, %c0_16], %18 {strides = array<i32>} : memref<3x256xf32, #tpu.memory_space<vmem>>, vector<3x256xf32>,
    return
  }
  func.func @transform_0(%arg0: i32) -> (i32, i32) {
    %c0_i32 = arith.constant 0 : i32
    %c0_i32_0 = arith.constant 0 : i32
    %c0_i32_1 = arith.constant 0 : i32
    return %c0_i32, %c0_i32_0 : i32, i32
  }
  func.func @transform_1(%arg0: i32) -> (i32, i32) {
    %c0_i32 = arith.constant 0 : i32
    %c0_i32_0 = arith.constant 0 : i32
    %c0_i32_1 = arith.constant 0 : i32
    return %c0_i32, %c0_i32_0 : i32, i32
  }
  func.func @transform_2(%arg0: i32) -> (i32, i32) {
    %c0_i32 = arith.constant 0 : i32
    %c0_i32_0 = arith.constant 0 : i32
    %c0_i32_1 = arith.constant 0 : i32
    return %c0_i32, %c0_i32_0 : i32, i32
  }
  func.func @transform_3(%arg0: i32) -> (i32, i32) {
    %c0_i32 = arith.constant 0 : i32
    %c0_i32_0 = arith.constant 0 : i32
    %c0_i32_1 = arith.constant 0 : i32
    return %c0_i32, %c0_i32_0 : i32, i32
  }
  func.func @transform_4(%arg0: i32) -> (i32, i32) {
    %c0_i32 = arith.constant 0 : i32
    %c0_i32_0 = arith.constant 0 : i32
    %c0_i32_1 = arith.constant 0 : i32
    return %c0_i32, %c0_i32_0 : i32, i32
  }
  func.func @transform_5(%arg0: i32) -> (i32, i32) {
    %c0_i32 = arith.constant 0 : i32
    %c0_i32_0 = arith.constant 0 : i32
    return %c0_i32, %arg0 : i32, i32
  }
  func.func @transform_6(%arg0: i32) -> (i32, i32) {
    %c0_i32 = arith.constant 0 : i32
    %c0_i32_0 = arith.constant 0 : i32
    return %c0_i32, %arg0 : i32, i32
  }
}

</mosaic_0001>

<llo_original>
// kernel: tpu_custom_call.1
$region0: #{tpu_custom_call.1}
  #allocation0 [shape = 'u32[]', space=smem, size = 0x4, offset = 0x4, fixed_abs, tag = 'smem constant byte address 0x4 - core index']
  #allocation1 [shape = 'u32[144,128]{1,0:T(1,128)}', space=vmem, size = 0x12000, scoped, tag = 'internal scratch']
  %s0 = inlined_call_operand.vmem [shape: f32[1,32], index: 0, kind: input, shape index: {}]
  %s1 = inlined_call_operand.vmem [shape: f32[32,4], index: 1, kind: input, shape index: {}]
  %s2 = inlined_call_operand.vmem [shape: f32[1,4], index: 2, kind: input, shape index: {}]
  %s3 = inlined_call_operand.vmem [shape: f32[3,4], index: 3, kind: input, shape index: {}]
  %s4 = inlined_call_operand.vmem [shape: f32[3,1], index: 4, kind: input, shape index: {}]
  %s5 = inlined_call_operand.vmem [shape: f32[4,256], index: 5, kind: input, shape index: {}]
  %s6 = inlined_call_operand.hbm [shape: f32[3,256], index: 6, kind: output, shape index: {}]
  %s7 = sld [smem:[#allocation0]]
  $region34: #{tpu_custom_call.1} parent=0
    _
  %s9 = ssub.s32 1, %s7
  %s10 = scalar_select 0, %s9, %s7
  $region1: #{tpu_custom_call.1} parent=0
    #allocation2 [shape = 'u8[4096]{0}', space=vmem, size = 0x1000, scoped, tag = 'output window, operand 0, single buffered']
    #allocation3 [shape = 's32[1]{0}', space=sflag, size = 0x4, scoped, tag = 'scoped memory for tpu_custom_call.1']
    %11 = vsyncpa [#allocation3], 0
    // Predicated region
    $region2: #{tpu_custom_call.1} parent=1 // pred_check
      _
    $region3: #{tpu_custom_call.1} parent=1 // pred_check_branch
      %13 = sbr.rel (0) target = $region5
    $region4: #{tpu_custom_call.1} parent=1 // pred_region
      _
    $region5: #{tpu_custom_call.1} parent=1 // pred_fallthru
      _
    // Predicated region
    $region6: #{tpu_custom_call.1} parent=1 // pred_check
      _
    $region7: #{tpu_custom_call.1} parent=1 // pred_check_branch
      %15 = sbr.rel (0) target = $region9
    $region8: #{tpu_custom_call.1} parent=1 // pred_region
      _
    $region9: #{tpu_custom_call.1} parent=1 // pred_fallthru
      _
    // Predicated region
    $region10: #{tpu_custom_call.1} parent=1 // pred_check
      _
    $region11: #{tpu_custom_call.1} parent=1 // pred_check_branch
      %17 = sbr.rel (0) target = $region13
    $region12: #{tpu_custom_call.1} parent=1 // pred_region
      _
    $region13: #{tpu_custom_call.1} parent=1 // pred_fallthru
      _
    // Predicated region
    $region14: #{tpu_custom_call.1} parent=1 // pred_check
      _
    $region15: #{tpu_custom_call.1} parent=1 // pred_check_branch
      %19 = sbr.rel (0) target = $region17
    $region16: #{tpu_custom_call.1} parent=1 // pred_region
      _
    $region17: #{tpu_custom_call.1} parent=1 // pred_fallthru
      _
    // Predicated region
    $region18: #{tpu_custom_call.1} parent=1 // pred_check
      _
    $region19: #{tpu_custom_call.1} parent=1 // pred_check_branch
      %21 = sbr.rel (0) target = $region21
    $region20: #{tpu_custom_call.1} parent=1 // pred_region
      _
    $region21: #{tpu_custom_call.1} parent=1 // pred_fallthru
      _
    // Predicated region
    $region22: #{tpu_custom_call.1} parent=1 // pred_check
      _
    $region23: #{tpu_custom_call.1} parent=1 // pred_check_branch
      %23 = sbr.rel (0) target = $region25
    $region24: #{tpu_custom_call.1} parent=1 // pred_region
      _
    $region25: #{tpu_custom_call.1} parent=1 // pred_fallthru
      _
    %v24 = vld [vmem:[%s0] sm:$0x1]
    %v25 = vmul.f32 %v24, 0.17677669
    %v26 = vld [vmem:[%s1] sm:$0xff]
    %v27 = vld [vmem:[%s1 + $0x8] sm:$0xff]
    %v28 = vld [vmem:[%s1 + $0x10] sm:$0xff]
    %v29 = vld [vmem:[%s1 + $0x18] sm:$0xff]
    %v30 = vld [vmem:[%s2] sm:$0x1]
    %vm31 = vcmask 261120
    %v33 = vsel %vm31, %v25, 0
    %35 = vmatprep.subr.mxu0 0.0
    %36 = vmatpush1.msra.mxu0 %v26
    %37 = vmatprep.subr.mxu0 0.0
    %38 = vmatpush1.msra.mxu0 %v27
    %39 = vmatprep.subr.mxu0 0.0
    %40 = vmatpush1.msra.mxu0 %v28
    %41 = vmatprep.subr.mxu0 0.0
    %42 = vmatpush1.msra.mxu0 %v29
    %43 = vmatprep.subr.mxu0 0.0
    %44 = vmatpush1.msra.mxu0 0.0
    %45 = vmatprep.subr.mxu0 0.0
    %46 = vmatpush1.msra.mxu0 0.0
    %47 = vmatprep.subr.mxu0 0.0
    %48 = vmatpush1.msra.mxu0 0.0
    %49 = vmatprep.subr.mxu0 0.0
    %50 = vmatpush1.msra.mxu0 0.0
    %51 = vmatprep.subr.mxu0 0.0
    %52 = vmatpush1.msra.mxu0 0.0
    %53 = vmatprep.subr.mxu0 0.0
    %54 = vmatpush1.msra.mxu0 0.0
    %55 = vmatprep.subr.mxu0 0.0
    %56 = vmatpush1.msra.mxu0 0.0
    %57 = vmatprep.subr.mxu0 0.0
    %58 = vmatpush1.msra.mxu0 0.0
    %59 = vmatprep.subr.mxu0 0.0
    %60 = vmatpush1.msra.mxu0 0.0
    %61 = vmatprep.subr.mxu0 0.0
    %62 = vmatpush1.msra.mxu0 0.0
    %63 = vmatprep.subr.mxu0 0.0
    %64 = vmatpush1.msra.mxu0 0.0
    %65 = vmatprep.subr.mxu0 0.0
    %66 = vmatpush1.msra.mxu0 0.0
    %67 = vmatprep.subr.mxu0 0.0
    %68 = vmatpush1.msra.mxu0 0.0
    %69 = vmatprep.subr.mxu0 0.0
    %70 = vmatpush1.msra.mxu0 0.0
    %71 = vmatprep.subr.mxu0 0.0
    %72 = vmatpush1.msra.mxu0 0.0
    %73 = vmatprep.subr.mxu0 0.0
    %74 = vmatpush1.msra.mxu0 0.0
    %75 = vmatprep.subr.mxu0 0.0
    %76 = vmatpush1.msra.mxu0 0.0
    %77 = vmatprep.subr.mxu0 0.0
    %78 = vmatpush1.msra.mxu0 0.0
    %79 = vmatprep.subr.mxu0 0.0
    %80 = vmatpush1.msra.mxu0 0.0
    %81 = vmatprep.subr.mxu0 0.0
    %82 = vmatpush1.msra.mxu0 0.0
    %83 = vmatprep.subr.mxu0 0.0
    %84 = vmatpush1.msra.mxu0 0.0
    %85 = vmatprep.subr.mxu0 0.0
    %86 = vmatpush1.msra.mxu0 0.0
    %87 = vmatprep.subr.mxu0 0.0
    %88 = vmatpush1.msra.mxu0 0.0
    %89 = vmatprep.subr.mxu0 0.0
    %90 = vmatpush1.msra.mxu0 0.0
    %91 = vmatprep.subr.mxu0 0.0
    %92 = vmatpush1.msra.mxu0 0.0
    %93 = vmatprep.subr.mxu0 0.0
    %94 = vmatpush1.msra.mxu0 0.0
    %95 = vmatprep.subr.mxu0 0.0
    %96 = vmatpush1.msra.mxu0 0.0
    %97 = vmatprep.subr.mxu0 0.0
    %98 = vmatpush1.msra.mxu0 0.0
    %99 = vmatprep.mubr.f32.mxu0 0.0
    %100 = vmatmul.mubr.f32.gmra.mrb[0].mxu0 %v33
    %v101 = vpop.f32.mrb[0].mxu0
    %v102 = vadd.f32 %v30, %v101
    %v103 = vpop.f32.mrb[0].mxu0
    %104 = vdwg.mxu0
    %v105 = vld [vmem:[%s3] sm:$0x7]
    %v106 = vmul.f32 %v102, 0.5
    %v107 = vlaneseq
    %v108 = vshrl.u32 %v107, 7
    %v109 = vsub.s32 0, %v108
    %v110 = vrot.slane %v106, %v109
    %v111 = vmul.f32 %v105, %v110
    %v112 = vld [vmem:[%s5] sm:$0xff]
    %v113 = vld [vmem:[%s4] sm:$0x7]
    %115 = vset.pattern.permute.xlu0 0
    %116 = vperm.xlu0 %115, %v113
    %v117 = vpop.permute.xlu0 %116
    %v120 = vcombine.high %v112, %v112
    %vm121 = vcmask 31744
    %v123 = vsel %vm121, %v111, 0
    %vm125 = vcmask 1043456
    %v126 = vsel %vm125, %v112, 0
    %v128 = vsel %vm125, %v120, 0
    %130 = vmatprep.subr.mxu0 %v128
    %131 = vmatpush1.msra.mxu0 %v126
    %132 = vmatprep.subr.mxu0 0.0
    %133 = vmatpush1.msra.mxu0 0.0
    %134 = vmatprep.subr.mxu0 0.0
    %135 = vmatpush1.msra.mxu0 0.0
    %136 = vmatprep.subr.mxu0 0.0
    %137 = vmatpush1.msra.mxu0 0.0
    %138 = vmatprep.subr.mxu0 0.0
    %139 = vmatpush1.msra.mxu0 0.0
    %140 = vmatprep.subr.mxu0 0.0
    %141 = vmatpush1.msra.mxu0 0.0
    %142 = vmatprep.subr.mxu0 0.0
    %143 = vmatpush1.msra.mxu0 0.0
    %144 = vmatprep.subr.mxu0 0.0
    %145 = vmatpush1.msra.mxu0 0.0
    %146 = vmatprep.subr.mxu0 0.0
    %147 = vmatpush1.msra.mxu0 0.0
    %148 = vmatprep.subr.mxu0 0.0
    %149 = vmatpush1.msra.mxu0 0.0
    %150 = vmatprep.subr.mxu0 0.0
    %151 = vmatpush1.msra.mxu0 0.0
    %152 = vmatprep.subr.mxu0 0.0
    %153 = vmatpush1.msra.mxu0 0.0
    %154 = vmatprep.subr.mxu0 0.0
    %155 = vmatpush1.msra.mxu0 0.0
    %156 = vmatprep.subr.mxu0 0.0
    %157 = vmatpush1.msra.mxu0 0.0
    %158 = vmatprep.subr.mxu0 0.0
    %159 = vmatpush1.msra.mxu0 0.0
    %160 = vmatprep.subr.mxu0 0.0
    %161 = vmatpush1.msra.mxu0 0.0
    %162 = vmatprep.subr.mxu0 0.0
    %163 = vmatpush1.msra.mxu0 0.0
    %164 = vmatprep.subr.mxu0 0.0
    %165 = vmatpush1.msra.mxu0 0.0
    %166 = vmatprep.subr.mxu0 0.0
    %167 = vmatpush1.msra.mxu0 0.0
    %168 = vmatprep.subr.mxu0 0.0
    %169 = vmatpush1.msra.mxu0 0.0
    %170 = vmatprep.subr.mxu0 0.0
    %171 = vmatpush1.msra.mxu0 0.0
    %172 = vmatprep.subr.mxu0 0.0
    %173 = vmatpush1.msra.mxu0 0.0
    %174 = vmatprep.subr.mxu0 0.0
    %175 = vmatpush1.msra.mxu0 0.0
    %176 = vmatprep.subr.mxu0 0.0
    %177 = vmatpush1.msra.mxu0 0.0
    %178 = vmatprep.subr.mxu0 0.0
    %179 = vmatpush1.msra.mxu0 0.0
    %180 = vmatprep.subr.mxu0 0.0
    %181 = vmatpush1.msra.mxu0 0.0
    %182 = vmatprep.subr.mxu0 0.0
    %183 = vmatpush1.msra.mxu0 0.0
    %184 = vmatprep.subr.mxu0 0.0
    %185 = vmatpush1.msra.mxu0 0.0
    %186 = vmatprep.subr.mxu0 0.0
    %187 = vmatpush1.msra.mxu0 0.0
    %188 = vmatprep.subr.mxu0 0.0
    %189 = vmatpush1.msra.mxu0 0.0
    %190 = vmatprep.subr.mxu0 0.0
    %191 = vmatpush1.msra.mxu0 0.0
    %192 = vmatprep.subr.mxu0 0.0
    %193 = vmatpush1.msra.mxu0 0.0
    %194 = vmatprep.mubr.f32.mxu0 0.0
    %195 = vmatmul.mubr.f32.gmra.mrb[0].mxu0 %v123
    %v196 = vpop.f32.mrb[0].mxu0
    %v197 = vadd.f32 %v117, %v196
    %v198 = vpop.f32.mrb[0].mxu0
    %v199 = vadd.f32 %v117, %v198
    %200 = vdwg.mxu0
    %v203 = vcombine.low %v197, %v199
    %205 = vst [vmem:[#allocation2] sm:$0x77] %v203
    // Predicated region
    $region26: #{tpu_custom_call.1} parent=1 // pred_check
      _
    $region27: #{tpu_custom_call.1} parent=1 // pred_check_branch
      %207 = sbr.rel (0) target = $region29
    $region28: #{tpu_custom_call.1} parent=1 // pred_region
      %s209 = ssub.s32 128, 128
      %210 = vsyncadd [#allocation3], %s209
      %s212 = sshll.u32 [#allocation2], 4
      %s213 = int_to_ptr.vmem [resolvable:$true] %s212
      %215 = dma.vmem_to_hbm [thread:$0]  %s213, 128, %s6, [#allocation3]
    $region29: #{tpu_custom_call.1} parent=1 // pred_fallthru
      _
    // Predicated region
    $region30: #{tpu_custom_call.1} parent=1 // pred_check
      _
    $region31: #{tpu_custom_call.1} parent=1 // pred_check_branch
      %217 = sbr.rel (0) target = $region33
    $region32: #{tpu_custom_call.1} parent=1 // pred_region
      %218 = dma.done [#allocation3], 128
    $region33: #{tpu_custom_call.1} parent=1 // pred_fallthru
      _
    %219 = vsyncpa [#allocation3], 1

</llo_original>
